<compile_context>
chip_gen: v6e
topology: v6e:2x2x1
jax: 0.10.0
libtpu: 0.0.40
codegen_flags: <defaults>
</compile_context>

<pallas_src>
import numpy as np
import jax
import jax.numpy as jnp
from jax import lax
from jax.experimental import pallas as pl
from jax.experimental.pallas import tpu as pltpu

_MiB = 1 << 20


# ----------------------------------------------------------------------------
# Laplacian construction (deterministic, mirrors the torch __init__ exactly)
# ----------------------------------------------------------------------------
def build_laplacian(nv: int, faces: np.ndarray) -> np.ndarray:
    laplacian = np.zeros([nv, nv]).astype(np.float32)
    laplacian[faces[:, 0], faces[:, 1]] = -1
    laplacian[faces[:, 1], faces[:, 0]] = -1
    laplacian[faces[:, 1], faces[:, 2]] = -1
    laplacian[faces[:, 2], faces[:, 1]] = -1
    laplacian[faces[:, 2], faces[:, 0]] = -1
    laplacian[faces[:, 0], faces[:, 2]] = -1
    r, c = np.diag_indices(laplacian.shape[0])
    laplacian[r, c] = -laplacian.sum(1)
    for i in range(nv):
        if laplacian[i, i] == 0:
            laplacian[i, :] /= 0.0001
        else:
            laplacian[i, :] /= laplacian[i, i]
    return laplacian


def _round_up(x: int, m: int) -> int:
    return ((x + m - 1) // m) * m


# ----------------------------------------------------------------------------
# Generation-aware device plan
# ----------------------------------------------------------------------------
def _device_plan():
    """Returns (vmem_budget_bytes, vmem_limit_bytes, default_num_parallel)."""
    kind = ""
    try:
        kind = jax.devices()[0].device_kind.lower()
    except Exception:
        pass
    cap = None
    try:
        cap = getattr(pltpu.get_tpu_info(), "vmem_capacity_bytes", None)
    except Exception:
        cap = None
    is_v7 = ("v7" in kind) or ("7x" in kind) or (cap is not None and cap <= 64 * _MiB)
    if is_v7:
        # v7x: 64 MiB physical VMEM, 2 TensorCores per chip.
        return 28 * _MiB, 40 * _MiB, 2
    # v5e / v6e: 128 MiB VMEM, single TensorCore.
    return 88 * _MiB, 100 * _MiB, 1


# ----------------------------------------------------------------------------
# Pallas kernel (grid = (parallel_slice, row_tile, k_tile), k innermost)
# ----------------------------------------------------------------------------
def _make_kernel(tk: int):
    def kernel(lap_ref, d_ref, out_ref, mm_ref, sq_ref):
        i = pl.program_id(1)          # row tiles of L (arbitrary)
        k = pl.program_id(2)          # contraction tiles (arbitrary, innermost)
        ni = pl.num_programs(1)
        nk = pl.num_programs(2)

        @pl.when((i == 0) & (k == 0))
        def _():
            sq_ref[...] = jnp.zeros_like(sq_ref)

        @pl.when(k == 0)
        def _():
            mm_ref[...] = jnp.zeros_like(mm_ref)

        # Slice the resident difference tensor along K (128-aligned offset).
        off = pl.multiple_of(k * tk, tk)
        d_blk = d_ref[:, pl.ds(off, tk)]

        # (BDp, tk) . (tm, tk)^T -> (BDp, tm), lane-dense along tm; f32 acc.
        mm_ref[...] += lax.dot_general(
            d_blk,
            lap_ref[...],
            dimension_numbers=(((1,), (1,)), ((), ())),
            preferred_element_type=jnp.float32,
        )

        # Square only once the full contraction for this row tile is done.
        @pl.when(k == nk - 1)
        def _():
            p = mm_ref[...]
            sq_ref[...] += p * p

        @pl.when((i == ni - 1) & (k == nk - 1))
        def _():
            out_ref[...] = jnp.sum(sq_ref[...], axis=1, keepdims=True)[None]

    return kernel


# ----------------------------------------------------------------------------
# Module-like wrapper: pad/cast L once, cache per (B, D) shape
# ----------------------------------------------------------------------------
class LaplacianLossPallas:
    def __init__(self, nv: int, faces: np.ndarray, average: bool = False,
                 lap_dtype=jnp.bfloat16, num_parallel=None):
        self.nv = int(nv)
        self.average = bool(average)
        self.lap_dtype = jnp.dtype(lap_dtype)
        self.num_parallel = num_parallel
        self.laplacian = build_laplacian(self.nv, np.asarray(faces))  # np.float32
        self._cache = {}

    def __call__(self, x, targ):
        B, nv_x, D = x.shape
        assert nv_x == self.nv
        impl, lap_padded = self._get_impl(int(B), int(D))
        return impl(lap_padded, x, targ)

    def _get_impl(self, B: int, D: int):
        key = (B, D)
        if key in self._cache:
            return self._cache[key]

        nv = self.nv
        BD = B * D
        BDp = _round_up(max(BD, 1), 8)        # full-sublane MXU output / acc

        vmem_budget, vmem_limit, num_parallel = _device_plan()
        if self.num_parallel is not None:
            num_parallel = int(self.num_parallel)

        lap_itemsize = self.lap_dtype.itemsize
        d_dtype = (jnp.float32 if self.lap_dtype == jnp.dtype(jnp.float32)
                   else jnp.bfloat16)
        d_itemsize = jnp.dtype(d_dtype).itemsize

        # --- tiling plan ----------------------------------------------------
        nv_cols = _round_up(nv, 128)
        rows_per_core = pl.cdiv(nv, num_parallel)

        # Row tile (= lane dim of the MXU output): multiple of 128, <= 512,
        # balanced over the row-tile count to minimize zero-padding.
        tm = max(128, min(512, _round_up(rows_per_core, 128)))
        ni = pl.cdiv(rows_per_core, tm)
        tm = max(128, _round_up(pl.cdiv(rows_per_core, ni), 128))

        # VMEM: resident (double-buffered, but DMA'd once) difference tensor
        # + the two f32 accumulators; the rest goes to the L double-buffer.
        resident = 2 * BDp * nv_cols * d_itemsize
        scratch = 2 * BDp * tm * 4
        avail = vmem_budget - resident - scratch
        while tm > 128 and 2 * tm * 128 * lap_itemsize > avail:
            tm = max(128, (tm // 2) // 128 * 128)
            scratch = 2 * BDp * tm * 4
            avail = vmem_budget - resident - scratch
        ni = pl.cdiv(rows_per_core, tm)

        # Contraction tile: as large as the budget allows, balanced over nk.
        tk_max = max(128, min(nv_cols,
                              (avail // (2 * tm * lap_itemsize)) // 128 * 128))
        nk = pl.cdiv(nv_cols, tk_max)
        tk = _round_up(pl.cdiv(nv_cols, nk), 128)
        nv_cols_pad = nk * tk
        rows_pad = num_parallel * ni * tm

        # --- constant, padded, cast Laplacian (done ONCE, cached) -----------
        lap_np = np.zeros((rows_pad, nv_cols_pad), dtype=np.float32)
        lap_np[:nv, :nv] = self.laplacian
        lap_padded = jnp.asarray(lap_np, dtype=self.lap_dtype)

        grid = (num_parallel, ni, nk)
        kernel = _make_kernel(tk)

        kernel_call = pl.pallas_call(
            kernel,
            out_shape=jax.ShapeDtypeStruct((num_parallel, BDp, 1), jnp.float32),
            grid_spec=pltpu.PrefetchScalarGridSpec(
                num_scalar_prefetch=0,
                grid=grid,
                in_specs=[
                    # Laplacian row/col tile (dominant, streamed HBM traffic).
                    pl.BlockSpec((tm, tk), lambda p, i, k: (p * ni + i, k)),
                    # Fused difference: constant block index -> fetched once,
                    # stays resident; sliced along K inside the kernel.
                    pl.BlockSpec((BDp, nv_cols_pad), lambda p, i, k: (0, 0)),
                ],
                out_specs=pl.BlockSpec((1, BDp, 1), lambda p, i, k: (p, 0, 0)),
                scratch_shapes=[
                    pltpu.VMEM((BDp, tm), jnp.float32),   # un-squared acc over k
                    pltpu.VMEM((BDp, tm), jnp.float32),   # sum-of-squares acc
                ],
            ),
            compiler_params=pltpu.CompilerParams(
                dimension_semantics=("parallel", "arbitrary", "arbitrary"),
                vmem_limit_bytes=vmem_limit,
            ),
        )

        average = self.average

        @jax.jit
        def impl(lap, x, targ):
            # Fused difference, laid out (B*D, NV): NV is the contraction dim.
            d = x.astype(jnp.float32) - targ.astype(jnp.float32)
            d = jnp.transpose(d, (0, 2, 1)).reshape(BD, nv)
            d = jnp.pad(d, ((0, BDp - BD), (0, nv_cols_pad - nv)))
            d = d.astype(d_dtype)
            out = kernel_call(lap, d)                 # (num_parallel, BDp, 1)
            per_bd = jnp.sum(out, axis=0)[:BD, 0]     # (B*D,)
            diff = per_bd.reshape(B, D).sum(axis=1)   # (B,)
            if average:
                return jnp.sum(diff) / B
            return diff

        self._cache[key] = (impl, lap_padded)
        return impl, lap_padded


# ----------------------------------------------------------------------------
# Pure-JAX reference (mirrors the torch forward: two matmuls, then diff^2 sum)
# ----------------------------------------------------------------------------
def laplacian_loss_ref(laplacian, x, targ, average: bool = False):
    B = x.shape[0]
    lx = jnp.einsum("rn,bnd->brd", laplacian, x)
    lt = jnp.einsum("rn,bnd->brd", laplacian, targ)
    diff = jnp.sum((lx - lt) ** 2, axis=(1, 2))
    if average:
        return jnp.sum(diff) / B
    return diff


if __name__ == "__main__":
    NV = 128   # number of vertices
    NF = 128   # number of faces
    B = 2      # batch size
    D = 3      # xyz coordinates

    # Deterministic synthetic face connectivity (triangle-strip style).
    faces = np.stack(
        [np.arange(NF), (np.arange(NF) + 1) % NV, (np.arange(NF) + 2) % NV],
        axis=1,
    ).astype(np.int64)

    key = jax.random.PRNGKey(0)
    kx, kt = jax.random.split(key)
    x = jax.random.normal(kx, (B, NV, D), dtype=jnp.float32)
    targ = jax.random.normal(kt, (B, NV, D), dtype=jnp.float32)

    lap_f32 = jnp.asarray(build_laplacian(NV, faces))
    ref = laplacian_loss_ref(lap_f32, x, targ, average=False)
    ref_avg = laplacian_loss_ref(lap_f32, x, targ, average=True)

    # 1) Exact-structure check with an f32 Laplacian (matches torch numerics).
    loss_f32 = LaplacianLossPallas(NV, faces, average=False, lap_dtype=jnp.float32)
    out_f32 = jax.block_until_ready(loss_f32(x, targ))
    np.testing.assert_allclose(np.asarray(out_f32), np.asarray(ref),
                               rtol=1e-4, atol=1e-3)

    # 2) Default fast path: bf16 Laplacian / difference, f32 accumulation.
    loss_bf16 = LaplacianLossPallas(NV, faces, average=False)
    out_bf16 = jax.block_until_ready(loss_bf16(x, targ))
    np.testing.assert_allclose(np.asarray(out_bf16), np.asarray(ref),
                               rtol=5e-2, atol=1e-1)

    loss_bf16_avg = LaplacianLossPallas(NV, faces, average=True)
    out_avg = jax.block_until_ready(loss_bf16_avg(x, targ))
    np.testing.assert_allclose(np.asarray(out_avg), np.asarray(ref_avg),
                               rtol=5e-2, atol=1e-1)

    print("KERNEL_OK")
</pallas_src>

<mosaic_0001>
module attributes {stable_mosaic.version = 11 : i64} {
  func.func @kernel(%arg0: i32, %arg1: i32, %arg2: i32, %arg3: memref<128x128xf32, #tpu.memory_space<vmem>>, %arg4: memref<8x128xf32, #tpu.memory_space<vmem>>, %arg5: memref<1x8x1xf32, #tpu.memory_space<vmem>>, %arg6: memref<8x128xf32, #tpu.memory_space<vmem>>, %arg7: memref<8x128xf32, #tpu.memory_space<vmem>>) attributes {dimension_semantics = [#tpu.dimension_semantics<parallel>, #tpu.dimension_semantics<arbitrary>, #tpu.dimension_semantics<arbitrary>], iteration_bounds = array<i64: 1, 1, 1>, scalar_prefetch = 0 : i64, scratch_operands = 2 : i64, tpu.core_type = #tpu.core_type<tc>, window_params = [{transform_indices = @transform_0, window_bounds = array<i64: 128, 128>}, {pipeline_mode = #tpu.pipeline_mode<synchronous>, transform_indices = @transform_1, window_bounds = array<i64: 8, 128>}, {transform_indices = @transform_2, window_bounds = array<i64: 1, 8, 1>}]} {
    %c0_i32 = arith.constant 0 : i32
    %0 = arith.cmpi eq, %arg1, %c0_i32 : i32
    %c0_i32_0 = arith.constant 0 : i32
    %1 = arith.cmpi eq, %arg2, %c0_i32_0 : i32
    %2 = arith.andi %0, %1 : i1
    %3 = arith.extui %2 : i1 to i32
    %c0_i32_1 = arith.constant 0 : i32
    %4 = arith.cmpi ne, %3, %c0_i32_1 : i32
    scf.if %4 {
      %cst_15 = arith.constant 0.000000e+00 : f32
      %25 = vector.broadcast %cst_15 : f32 to vector<8x128xf32>
      %c0_16 = arith.constant 0 : index
      %c0_17 = arith.constant 0 : index
      %26 = vector.load %arg7[%c0_16, %c0_17] : memref<8x128xf32, #tpu.memory_space<vmem>>, vector<8x128xf32>
      tpu.vector_store %arg7[%c0_16, %c0_17], %25 {strides = array<i32>} : memref<8x128xf32, #tpu.memory_space<vmem>>, vector<8x128xf32>,
    } else {
    }
    %c0_i32_2 = arith.constant 0 : i32
    %5 = arith.cmpi eq, %arg2, %c0_i32_2 : i32
    %6 = arith.extui %5 : i1 to i32
    %c0_i32_3 = arith.constant 0 : i32
    %7 = arith.cmpi ne, %6, %c0_i32_3 : i32
    scf.if %7 {
      %cst_15 = arith.constant 0.000000e+00 : f32
      %25 = vector.broadcast %cst_15 : f32 to vector<8x128xf32>
      %c0_16 = arith.constant 0 : index
      %c0_17 = arith.constant 0 : index
      %26 = vector.load %arg6[%c0_16, %c0_17] : memref<8x128xf32, #tpu.memory_space<vmem>>, vector<8x128xf32>
      tpu.vector_store %arg6[%c0_16, %c0_17], %25 {strides = array<i32>} : memref<8x128xf32, #tpu.memory_space<vmem>>, vector<8x128xf32>,
    } else {
    }
    %c128_i32 = arith.constant 128 : i32
    %8 = arith.muli %arg2, %c128_i32 : i32
    %9 = tpu.assume_multiple %8, 128 : i32
    %c0 = arith.constant 0 : index
    %10 = arith.index_cast %9 : i32 to index
    %11 = vector.load %arg4[%c0, %10] : memref<8x128xf32, #tpu.memory_space<vmem>>, vector<8x128xf32>
    %c0_4 = arith.constant 0 : index
    %c0_5 = arith.constant 0 : index
    %12 = vector.load %arg6[%c0_4, %c0_5] : memref<8x128xf32, #tpu.memory_space<vmem>>, vector<8x128xf32>
    %c0_6 = arith.constant 0 : index
    %c0_7 = arith.constant 0 : index
    %13 = vector.load %arg3[%c0_6, %c0_7] : memref<128x128xf32, #tpu.memory_space<vmem>>, vector<128x128xf32>
    %cst = arith.constant dense<0.000000e+00> : vector<8x128xf32>
    %14 = tpu.matmul %11, %13, %cst {dimension_numbers = #tpu.dot_dimension_numbers<[1], [1], [0], [0], [0, 0, 1, 0], [], []>} : vector<8x128xf32>, vector<128x128xf32>, vector<8x128xf32> -> vector<8x128xf32>
    %15 = arith.addf %12, %14 : vector<8x128xf32>
    %c0_8 = arith.constant 0 : index
    %c0_9 = arith.constant 0 : index
    %16 = vector.load %arg6[%c0_8, %c0_9] : memref<8x128xf32, #tpu.memory_space<vmem>>, vector<8x128xf32>
    tpu.vector_store %arg6[%c0_8, %c0_9], %15 {strides = array<i32>} : memref<8x128xf32, #tpu.memory_space<vmem>>, vector<8x128xf32>,
    %c0_i32_10 = arith.constant 0 : i32
    %17 = arith.cmpi eq, %arg2, %c0_i32_10 : i32
    %18 = arith.extui %17 : i1 to i32
    %c0_i32_11 = arith.constant 0 : i32
    %19 = arith.cmpi ne, %18, %c0_i32_11 : i32
    scf.if %19 {
      %c0_15 = arith.constant 0 : index
      %c0_16 = arith.constant 0 : index
      %25 = vector.load %arg6[%c0_15, %c0_16] : memref<8x128xf32, #tpu.memory_space<vmem>>, vector<8x128xf32>
      %c0_17 = arith.constant 0 : index
      %c0_18 = arith.constant 0 : index
      %26 = vector.load %arg7[%c0_17, %c0_18] : memref<8x128xf32, #tpu.memory_space<vmem>>, vector<8x128xf32>
      %27 = arith.mulf %25, %25 : vector<8x128xf32>
      %28 = arith.addf %26, %27 : vector<8x128xf32>
      %c0_19 = arith.constant 0 : index
      %c0_20 = arith.constant 0 : index
      %29 = vector.load %arg7[%c0_19, %c0_20] : memref<8x128xf32, #tpu.memory_space<vmem>>, vector<8x128xf32>
      tpu.vector_store %arg7[%c0_19, %c0_20], %28 {strides = array<i32>} : memref<8x128xf32, #tpu.memory_space<vmem>>, vector<8x128xf32>,
    } else {
    }
    %c0_i32_12 = arith.constant 0 : i32
    %20 = arith.cmpi eq, %arg1, %c0_i32_12 : i32
    %c0_i32_13 = arith.constant 0 : i32
    %21 = arith.cmpi eq, %arg2, %c0_i32_13 : i32
    %22 = arith.andi %20, %21 : i1
    %23 = arith.extui %22 : i1 to i32
    %c0_i32_14 = arith.constant 0 : i32
    %24 = arith.cmpi ne, %23, %c0_i32_14 : i32
    scf.if %24 {
      %c0_15 = arith.constant 0 : index
      %c0_16 = arith.constant 0 : index
      %25 = vector.load %arg7[%c0_15, %c0_16] : memref<8x128xf32, #tpu.memory_space<vmem>>, vector<8x128xf32>
      %cst_17 = arith.constant dense<0.000000e+00> : vector<8xf32>
      %26 = vector.multi_reduction <add>, %25, %cst_17 [1] : vector<8x128xf32> to vector<8xf32>
      %27 = vector.shape_cast %26 : vector<8xf32> to vector<8x1xf32>
      %28 = vector.shape_cast %27 : vector<8x1xf32> to vector<1x8x1xf32>
      %c0_18 = arith.constant 0 : index
      %c0_19 = arith.constant 0 : index
      %c0_20 = arith.constant 0 : index
      %29 = vector.load %arg5[%c0_18, %c0_19, %c0_20] : memref<1x8x1xf32, #tpu.memory_space<vmem>>, vector<1x8x1xf32>
      tpu.vector_store %arg5[%c0_18, %c0_19, %c0_20], %28 {strides = array<i32>} : memref<1x8x1xf32, #tpu.memory_space<vmem>>, vector<1x8x1xf32>,
    } else {
    }
    return
  }
  func.func @transform_0(%arg0: i32, %arg1: i32, %arg2: i32) -> (i32, i32) {
    %c1_i32 = arith.constant 1 : i32
    %0 = arith.muli %arg0, %c1_i32 : i32
    %1 = arith.addi %0, %arg1 : i32
    %c0_i32 = arith.constant 0 : i32
    return %1, %arg2 : i32, i32
  }
  func.func @transform_1(%arg0: i32, %arg1: i32, %arg2: i32) -> (i32, i32) {
    %c0_i32 = arith.constant 0 : i32
    %c0_i32_0 = arith.constant 0 : i32
    %c0_i32_1 = arith.constant 0 : i32
    return %c0_i32, %c0_i32_0 : i32, i32
  }
  func.func @transform_2(%arg0: i32, %arg1: i32, %arg2: i32) -> (i32, i32, i32) {
    %c0_i32 = arith.constant 0 : i32
    %c0_i32_0 = arith.constant 0 : i32
    %c0_i32_1 = arith.constant 0 : i32
    return %arg0, %c0_i32, %c0_i32_0 : i32, i32, i32
  }
}

</mosaic_0001>

<llo_original>
// kernel: squeeze.1
$region0: #{squeeze.1}
  %s0 = inlined_call_operand.vmem [shape: f32[6], index: 0, kind: input, shape index: {}]
  %s1 = inlined_call_operand.vmem [shape: f32[2,3], index: 1, kind: output, shape index: {}]
  $region1: #{squeeze.1} parent=0
    #allocation0 [shape = 'u8[4096]{0}', space=vmem, size = 0x1000, scoped, tag = 'scoped mem for output reshape']
    #allocation1 [shape = 'u8[4096]{0}', space=vmem, size = 0x1000, scoped, tag = 'scoped mem for input reshape']
    %s3 = sshll.u32 1, 1
    %s4 = ssub.s32 %s3, 1
    %v5 = vld [vmem:[%s0] sm:%s4]
    %6 = vst [vmem:[#allocation1] sm:%s4] %v5
    %v7 = vld [vmem:[#allocation1] sm:$0x1]
    %vm8 = vcmask 23552
    %9 = vst.msk [vmem:[#allocation0] sm:$0x1] %vm8, %v7
    %v10 = vld [vmem:[#allocation1] sm:$0x1]
    %11 = vrot.lane.b32.xlu0 %v10, 125
    %v12 = vpop.permute.xlu0 %11
    %vm13 = vcmask 23552
    %s14 = scalar_lea.vmem [#allocation0], 1
    %15 = vst.msk [vmem:[%s14] sm:$0x1] %vm13, %v12
    %s17 = sshll.u32 1, 2
    %s18 = ssub.s32 %s17, 1
    %v20 = vld [vmem:[#allocation0] sm:%s18]
    %s21 = sshll.u32 1, 2
    %s22 = ssub.s32 %s21, 1
    %23 = vst [vmem:[%s1] sm:%s22] %v20

// kernel: impl.1
$region0: #{impl.1}
  #allocation0 [shape = 'u32[]', space=smem, size = 0x4, offset = 0x4, fixed_abs, tag = 'smem constant byte address 0x4 - core index']
  #allocation1 [shape = 'u32[144,128]{1,0:T(1,128)}', space=vmem, size = 0x12000, scoped, tag = 'internal scratch']
  #allocation2 [shape = 'f32[8,128]{1,0:T(8,128)}', space=vmem, size = 0x1000, scoped, tag = 'scratch operand']
  #allocation3 [shape = 'f32[8,128]{1,0:T(8,128)}', space=vmem, size = 0x1000, scoped, tag = 'scratch operand']
  %s0 = inlined_call_operand.hbm [shape: f32[128,128], index: 0, kind: input, shape index: {}]
  %s1 = inlined_call_operand.vmem [shape: f32[8,128], index: 1, kind: input, shape index: {}]
  %s2 = inlined_call_operand.vmem [shape: f32[1,8,1], index: 2, kind: output, shape index: {}]
  %s3 = sld [smem:[#allocation0]]
  $region38: #{impl.1} parent=0
    _
  %s5 = ssub.s32 1, %s3
  %s6 = scalar_select 0, %s5, %s3
  $region1: #{impl.1} parent=0
    #allocation4 [shape = 'u8[65536]{0}', space=vmem, size = 0x10000, scoped, tag = 'input window, operand 0, single buffered']
    #allocation5 [shape = 's32[1]{0}', space=sflag, size = 0x4, scoped, tag = 'scoped memory for impl.1']
    %7 = vsyncpa [#allocation5], 0
    // Predicated region
    $region2: #{impl.1} parent=1 // pred_check
      _
    $region3: #{impl.1} parent=1 // pred_check_branch
      %9 = sbr.rel (0) target = $region5
    $region4: #{impl.1} parent=1 // pred_region
      %s10 = sadd.s32 0, 0
      %s11 = smul.u32 16, %s10
      %s13 = ssub.s32 2048, 2048
      %14 = vsyncadd [#allocation5], %s13
      %s15 = smul.addr %s11, 128
      %s16 = scalar_lea.hbm %s0, %s15
      %s17 = sshll.u32 [#allocation4], 4
      %s18 = int_to_ptr.vmem [resolvable:$true] %s17
      %23 = dma.hbm_to_vmem [thread:$0]  %s16, 2048, %s18, [#allocation5], 128, 128, 8
    $region5: #{impl.1} parent=1 // pred_fallthru
      _
    // Predicated region
    $region6: #{impl.1} parent=1 // pred_check
      _
    $region7: #{impl.1} parent=1 // pred_check_branch
      %25 = sbr.rel (0) target = $region9
    $region8: #{impl.1} parent=1 // pred_region
      _
    $region9: #{impl.1} parent=1 // pred_fallthru
      _
    // Predicated region
    $region10: #{impl.1} parent=1 // pred_check
      _
    $region11: #{impl.1} parent=1 // pred_check_branch
      %27 = sbr.rel (0) target = $region13
    $region12: #{impl.1} parent=1 // pred_region
      %28 = dma.done [#allocation5], 2048
    $region13: #{impl.1} parent=1 // pred_fallthru
      _
    %s29 = sadd.s32 0, 0
    %s30 = smul.u32 16, %s29
    %p31 = scmp.eq.s32.totalorder 0, 0
    %p32 = scmp.eq.s32.totalorder 0, 0
    %p33 = pnand %p31, %p32
    %p34 = pneg %p33
    // Predicated region
    $region14: #{impl.1} parent=1 // pred_check
      _
    $region15: #{impl.1} parent=1 // pred_check_branch
      %36 = sbr.rel (%p33) target = $region17
    $region16: #{impl.1} parent=1 // pred_region
      %37 = vst [vmem:[#allocation3] sm:$0xff] 0.0
    $region17: #{impl.1} parent=1 // pred_fallthru
      _
    // Predicated region
    $region18: #{impl.1} parent=1 // pred_check
      %p38 = pneg %p32
    $region19: #{impl.1} parent=1 // pred_check_branch
      %40 = sbr.rel (%p38) target = $region21
    $region20: #{impl.1} parent=1 // pred_region
      %41 = vst [vmem:[#allocation2] sm:$0xff] 0.0
    $region21: #{impl.1} parent=1 // pred_fallthru
      _
    %s42 = smul.u32 0, 128
    %s43 = sshra.s32 %s42, 7
    %s44 = sand.u32 %s42, 127
    %s45 = scalar_lea.vmem %s1, %s43
    %v46 = vld [vmem:[%s45] sm:$0xff]
    %v47 = vld [vmem:[#allocation2] sm:$0xff]
    %v48 = vld [vmem:[#allocation4] sm:$0xff]
    %v49 = vld [vmem:[#allocation4 + $0x8] sm:$0xff]
    %v50 = vld [vmem:[#allocation4 + $0x10] sm:$0xff]
    %v51 = vld [vmem:[#allocation4 + $0x18] sm:$0xff]
    %v52 = vld [vmem:[#allocation4 + $0x20] sm:$0xff]
    %v53 = vld [vmem:[#allocation4 + $0x28] sm:$0xff]
    %v54 = vld [vmem:[#allocation4 + $0x30] sm:$0xff]
    %v55 = vld [vmem:[#allocation4 + $0x38] sm:$0xff]
    %v56 = vld [vmem:[#allocation4 + $0x40] sm:$0xff]
    %v57 = vld [vmem:[#allocation4 + $0x48] sm:$0xff]
    %v58 = vld [vmem:[#allocation4 + $0x50] sm:$0xff]
    %v59 = vld [vmem:[#allocation4 + $0x58] sm:$0xff]
    %v60 = vld [vmem:[#allocation4 + $0x60] sm:$0xff]
    %v61 = vld [vmem:[#allocation4 + $0x68] sm:$0xff]
    %v62 = vld [vmem:[#allocation4 + $0x70] sm:$0xff]
    %v63 = vld [vmem:[#allocation4 + $0x78] sm:$0xff]
    %64 = vmatprep.subr.mxu0 0.0
    %65 = vmatpush1.xpose.msra.mxu0 %v63
    %66 = vmatprep.subr.mxu0 0.0
    %67 = vmatpush1.xpose.msra.mxu0 %v62
    %68 = vmatprep.subr.mxu0 0.0
    %69 = vmatpush1.xpose.msra.mxu0 %v61
    %70 = vmatprep.subr.mxu0 0.0
    %71 = vmatpush1.xpose.msra.mxu0 %v60
    %72 = vmatprep.subr.mxu0 0.0
    %73 = vmatpush1.xpose.msra.mxu0 %v59
    %74 = vmatprep.subr.mxu0 0.0
    %75 = vmatpush1.xpose.msra.mxu0 %v58
    %76 = vmatprep.subr.mxu0 0.0
    %77 = vmatpush1.xpose.msra.mxu0 %v57
    %78 = vmatprep.subr.mxu0 0.0
    %79 = vmatpush1.xpose.msra.mxu0 %v56
    %80 = vmatprep.subr.mxu0 0.0
    %81 = vmatpush1.xpose.msra.mxu0 %v55
    %82 = vmatprep.subr.mxu0 0.0
    %83 = vmatpush1.xpose.msra.mxu0 %v54
    %84 = vmatprep.subr.mxu0 0.0
    %85 = vmatpush1.xpose.msra.mxu0 %v53
    %86 = vmatprep.subr.mxu0 0.0
    %87 = vmatpush1.xpose.msra.mxu0 %v52
    %88 = vmatprep.subr.mxu0 0.0
    %89 = vmatpush1.xpose.msra.mxu0 %v51
    %90 = vmatprep.subr.mxu0 0.0
    %91 = vmatpush1.xpose.msra.mxu0 %v50
    %92 = vmatprep.subr.mxu0 0.0
    %93 = vmatpush1.xpose.msra.mxu0 %v49
    %94 = vmatprep.subr.mxu0 0.0
    %95 = vmatpush1.xpose.msra.mxu0 %v48
    %96 = vmatprep.subr.mxu0 0.0
    %97 = vmatpush2.xpose.msra.mxu0 0.0
    %98 = vmatprep.subr.mxu0 0.0
    %99 = vmatpush2.xpose.msra.mxu0 0.0
    %100 = vmatprep.subr.mxu0 0.0
    %101 = vmatpush2.xpose.msra.mxu0 0.0
    %102 = vmatprep.subr.mxu0 0.0
    %103 = vmatpush2.xpose.msra.mxu0 0.0
    %104 = vmatprep.subr.mxu0 0.0
    %105 = vmatpush2.xpose.msra.mxu0 0.0
    %106 = vmatprep.subr.mxu0 0.0
    %107 = vmatpush2.xpose.msra.mxu0 0.0
    %108 = vmatprep.subr.mxu0 0.0
    %109 = vmatpush2.xpose.msra.mxu0 0.0
    %110 = vmatprep.subr.mxu0 0.0
    %111 = vmatpush2.xpose.msra.mxu0 0.0
    %112 = vmatprep.subr.mxu0 0.0
    %113 = vmatpush2.xpose.msra.mxu0 0.0
    %114 = vmatprep.subr.mxu0 0.0
    %115 = vmatpush2.xpose.msra.mxu0 0.0
    %116 = vmatprep.subr.mxu0 0.0
    %117 = vmatpush2.xpose.msra.mxu0 0.0
    %118 = vmatprep.subr.mxu0 0.0
    %119 = vmatpush2.xpose.msra.mxu0 0.0
    %120 = vmatprep.subr.mxu0 0.0
    %121 = vmatpush2.xpose.msra.mxu0 0.0
    %122 = vmatprep.subr.mxu0 0.0
    %123 = vmatpush2.xpose.msra.mxu0 0.0
    %124 = vmatprep.subr.mxu0 0.0
    %125 = vmatpush2.xpose.msra.mxu0 0.0
    %126 = vmatprep.subr.mxu0 0.0
    %127 = vmatpush2.xpose.msra.mxu0 0.0
    %128 = vmatprep.mubr.f32.mxu0 0.0
    %129 = vmatmul.mubr.f32.gmra.mxu0 %v46
    %v130 = vpop.f32.mrf.mxu0
    %v131 = vadd.f32 0.0, %v130
    %v132 = vpop.f32.mrf.mxu0
    %133 = vdwg.mxu0
    %v134 = vadd.f32 %v47, %v131
    %135 = vst [vmem:[#allocation2] sm:$0xff] %v134
    // Predicated region
    $region22: #{impl.1} parent=1 // pred_check
      %p136 = pneg %p32
    $region23: #{impl.1} parent=1 // pred_check_branch
      %138 = sbr.rel (%p136) target = $region25
    $region24: #{impl.1} parent=1 // pred_region
      %v139 = vld [vmem:[#allocation2] sm:$0xff]
      %v140 = vld [vmem:[#allocation3] sm:$0xff]
      %v141 = vmul.f32 %v139, %v139
      %v142 = vadd.f32 %v140, %v141
      %143 = vst [vmem:[#allocation3] sm:$0xff] %v142
    $region25: #{impl.1} parent=1 // pred_fallthru
      _
    // Predicated region
    $region26: #{impl.1} parent=1 // pred_check
      _
    $region27: #{impl.1} parent=1 // pred_check_branch
      %145 = sbr.rel (%p33) target = $region29
    $region28: #{impl.1} parent=1 // pred_region
      %v146 = vld [vmem:[#allocation3] sm:$0xff]
      %147 = vadd.xlane.f32.xlu0 %v146
      %v148 = vpop.xlane.xlu0 %147
      %vm149 = vcmask 7168
      %150 = vst.msk [vmem:[%s2] sm:$0xff] %vm149, %v148
    $region29: #{impl.1} parent=1 // pred_fallthru
      _
    // Predicated region
    $region30: #{impl.1} parent=1 // pred_check
      _
    $region31: #{impl.1} parent=1 // pred_check_branch
      %152 = sbr.rel (0) target = $region33
    $region32: #{impl.1} parent=1 // pred_region
      _
    $region33: #{impl.1} parent=1 // pred_fallthru
      _
    // Predicated region
    $region34: #{impl.1} parent=1 // pred_check
      _
    $region35: #{impl.1} parent=1 // pred_check_branch
      %154 = sbr.rel (0) target = $region37
    $region36: #{impl.1} parent=1 // pred_region
      _
    $region37: #{impl.1} parent=1 // pred_fallthru
      _
    %155 = vsyncpa [#allocation5], 1

</llo_original>
